<compile_context>
chip_gen: v7x
topology: tpu7x:2x2x1
jax: 0.10.0
libtpu: 0.0.40
codegen_flags: <defaults>
</compile_context>

<pallas_src>
import jax
import jax.numpy as jnp
from jax.experimental import pallas as pl
from jax.experimental.pallas import tpu as pltpu

_LANE = 128


# ----------------------------- kernel bodies ---------------------------------

def _forward_block(x, w1, b1, w2, b2, w3, b3):
    # Feature-major: x (obs, TB); w (out, in); b (out, 1); result (out, TB).
    h1 = jnp.maximum(jnp.dot(w1, x, preferred_element_type=jnp.float32) + b1, 0.0)
    h2 = jnp.maximum(jnp.dot(w2, h1, preferred_element_type=jnp.float32) + b2, 0.0)
    return jnp.dot(w3, h2, preferred_element_type=jnp.float32) + b3


def _greedy_block(q):
    # q: (action_size, TB) -> (1, TB) int32, first-index tie-break like argmax.
    a_n = q.shape[0]
    if a_n == 2:
        # Pure VPU compare of two sublane rows; no XLU / cross-lane traffic.
        return (q[1:2, :] > q[0:1, :]).astype(jnp.int32)
    idx = jax.lax.broadcasted_iota(jnp.int32, q.shape, 0)
    maxv = jnp.max(q, axis=0, keepdims=True)
    return jnp.min(jnp.where(q == maxv, idx, jnp.int32(a_n)),
                   axis=0, keepdims=True).astype(jnp.int32)


def _mlp_kernel(x_ref, w1_ref, b1_ref, w2_ref, b2_ref, w3_ref, b3_ref, q_ref):
    q = _forward_block(x_ref[...], w1_ref[...], b1_ref[...], w2_ref[...],
                       b2_ref[...], w3_ref[...], b3_ref[...])
    q_ref[...] = q.astype(q_ref.dtype)


def _mlp_q_act_kernel(x_ref, w1_ref, b1_ref, w2_ref, b2_ref, w3_ref, b3_ref,
                      q_ref, a_ref):
    q = _forward_block(x_ref[...], w1_ref[...], b1_ref[...], w2_ref[...],
                       b2_ref[...], w3_ref[...], b3_ref[...])
    q_ref[...] = q.astype(q_ref.dtype)
    a_ref[...] = _greedy_block(q)


def _mlp_act_kernel(x_ref, w1_ref, b1_ref, w2_ref, b2_ref, w3_ref, b3_ref, a_ref):
    # Action-only path: no Q writeback at all.
    q = _forward_block(x_ref[...], w1_ref[...], b1_ref[...], w2_ref[...],
                       b2_ref[...], w3_ref[...], b3_ref[...])
    a_ref[...] = _greedy_block(q)


# ----------------------------- tiling ----------------------------------------

def _batch_tiling(B, batch_tile):
    """Pick (tile, padded_B, grid) over the lane (batch) axis."""
    if B <= 2 * _LANE:
        # Single full-extent block: no 128-divisibility requirement, no padding.
        return B, B, (1,)
    # >= 2 grid steps so v7x's two TensorCores split the batch.
    tb = max(_LANE, min(batch_tile, pl.cdiv(pl.cdiv(B, 2), _LANE) * _LANE))
    steps = pl.cdiv(B, tb)
    # Shrink the tile to ~ceil(B/steps) (rounded to 128) to minimize tail pad.
    tb = pl.cdiv(pl.cdiv(B, steps), _LANE) * _LANE
    return tb, steps * tb, (steps,)


# ----------------------------- wrappers ---------------------------------------

def function_approximator_forward_t(x_t, params, *, batch_tile=16384,
                                     return_q=True, return_greedy_action=False):
    """Native (lane-dense) entry point.

    x_t: (obs_size, B) float32, feature-major (batch on lanes).
    params: w{1,2,3} in PyTorch (out, in) layout, b{1,2,3} as (out, 1).
    Returns q_t (action_size, B) and/or greedy actions (B,) int32.
    """
    if not (return_q or return_greedy_action):
        raise ValueError("request at least one of return_q / return_greedy_action")

    w1, b1 = params["w1"], params["b1"]
    w2, b2 = params["w2"], params["b2"]
    w3, b3 = params["w3"], params["b3"]

    obs, B = x_t.shape
    action_size = w3.shape[0]

    batch_tile = max(_LANE, (int(batch_tile) // _LANE) * _LANE)
    tb, bp, grid = _batch_tiling(B, batch_tile)
    xp = x_t if bp == B else jnp.pad(x_t, ((0, 0), (0, bp - B)))

    def _resident(arr):  # weights/biases: same (full) block every grid step
        return pl.BlockSpec(arr.shape, lambda i: (0, 0))

    in_specs = [
        pl.BlockSpec((obs, tb), lambda i: (0, i)),   # x: tiled over batch lanes
        _resident(w1), _resident(b1),
        _resident(w2), _resident(b2),
        _resident(w3), _resident(b3),
    ]
    q_spec = pl.BlockSpec((action_size, tb), lambda i: (0, i))
    a_spec = pl.BlockSpec((1, tb), lambda i: (0, i))
    q_shape = jax.ShapeDtypeStruct((action_size, bp), jnp.float32)
    a_shape = jax.ShapeDtypeStruct((1, bp), jnp.int32)

    cp = pltpu.CompilerParams(
        dimension_semantics=("parallel",))  # shards batch across TCs on v7x
    args = (xp, w1, b1, w2, b2, w3, b3)

    if return_q and return_greedy_action:
        q, act = pl.pallas_call(
            _mlp_q_act_kernel, out_shape=(q_shape, a_shape), grid=grid,
            in_specs=in_specs, out_specs=(q_spec, a_spec),
            compiler_params=cp)(*args)
        if bp != B:
            q, act = q[:, :B], act[:, :B]
        return q, act[0]

    if return_greedy_action:
        act = pl.pallas_call(
            _mlp_act_kernel, out_shape=a_shape, grid=grid,
            in_specs=in_specs, out_specs=a_spec,
            compiler_params=cp)(*args)
        return act[0] if bp == B else act[0, :B]

    q = pl.pallas_call(
        _mlp_kernel, out_shape=q_shape, grid=grid,
        in_specs=in_specs, out_specs=q_spec,
        compiler_params=cp)(*args)
    return q if bp == B else q[:, :B]


def function_approximator_forward(x, params, *, batch_tile=16384,
                                  return_q=True, return_greedy_action=False):
    """PyTorch-interface-compatible wrapper: x (B, obs) -> q (B, action_size).

    Thin transpose shim around the lane-dense kernel; hot loops should keep
    observations feature-major and call function_approximator_forward_t.
    """
    out = function_approximator_forward_t(
        x.T, params, batch_tile=batch_tile,
        return_q=return_q, return_greedy_action=return_greedy_action)
    if return_q and return_greedy_action:
        q_t, act = out
        return q_t.T, act
    if return_greedy_action:
        return out
    return out.T


# ----------------------------- params / reference -----------------------------

def init_params(key, obs_size, hidden_size, action_size):
    """PyTorch nn.Linear init U(-1/sqrt(fan_in), 1/sqrt(fan_in)).  Weights are
    stored in the kernel's native (out_features, in_features) layout (same as
    PyTorch) and biases as (out_features, 1) — zero per-call layout glue."""
    keys = jax.random.split(key, 6)

    def linear(kw, kb, fan_in, fan_out):
        bound = 1.0 / jnp.sqrt(jnp.float32(fan_in))
        w = jax.random.uniform(kw, (fan_out, fan_in), jnp.float32, -bound, bound)
        b = jax.random.uniform(kb, (fan_out, 1), jnp.float32, -bound, bound)
        return w, b

    w1, b1 = linear(keys[0], keys[1], obs_size, hidden_size)
    w2, b2 = linear(keys[2], keys[3], hidden_size, hidden_size)
    w3, b3 = linear(keys[4], keys[5], hidden_size, action_size)
    return {"w1": w1, "b1": b1, "w2": w2, "b2": b2, "w3": w3, "b3": b3}


def _reference(x, params):
    """Batch-major reference matching torch semantics: x (B, obs) -> (B, actions)."""
    h1 = jnp.maximum(x @ params["w1"].T + params["b1"][:, 0], 0.0)
    h2 = jnp.maximum(h1 @ params["w2"].T + params["b2"][:, 0], 0.0)
    return h2 @ params["w3"].T + params["b3"][:, 0]


# ----------------------------- test -------------------------------------------

if __name__ == "__main__":
    obs_size, hidden_size, action_size = 4, 32, 2

    key = jax.random.PRNGKey(0)
    k_params, k1, k2, k3 = jax.random.split(key, 4)
    params = init_params(k_params, obs_size, hidden_size, action_size)

    # --- tiny inference batch: single grid step, lane-dense, no padding -------
    x = jax.random.normal(k1, (8, obs_size), jnp.float32)
    ref = _reference(x, params)
    q = jax.block_until_ready(function_approximator_forward(x, params))
    assert q.shape == (8, action_size)
    assert jnp.allclose(q, ref, atol=1e-4, rtol=1e-5)

    # --- DQN act() path: greedy action only (no Q writeback) ------------------
    act = jax.block_until_ready(function_approximator_forward(
        x, params, return_q=False, return_greedy_action=True))
    assert jnp.array_equal(act, jnp.argmax(ref, axis=-1).astype(jnp.int32))

    # --- fused Q + greedy action ----------------------------------------------
    q2, act2 = function_approximator_forward(x, params, return_greedy_action=True)
    q2, act2 = jax.block_until_ready((q2, act2))
    assert jnp.allclose(q2, ref, atol=1e-4, rtol=1e-5)
    assert jnp.array_equal(act2, jnp.argmax(ref, axis=-1).astype(jnp.int32))

    # --- training-size batch, native feature-major path: 512 -> 2 steps of 256,
    #     lane-dense, no padding, batch split across TCs on v7x ----------------
    xb_t = jax.random.normal(k2, (obs_size, 512), jnp.float32)
    qb_t = jax.block_until_ready(function_approximator_forward_t(xb_t, params))
    refb = _reference(xb_t.T, params)
    assert qb_t.shape == (action_size, 512)
    assert jnp.allclose(qb_t.T, refb, atol=1e-4, rtol=1e-5)

    # --- ragged batch: exercises the pad + slice fallback (300 -> 2x256) ------
    xr = jax.random.normal(k3, (300, obs_size), jnp.float32)
    qr = jax.block_until_ready(function_approximator_forward(xr, params))
    assert qr.shape == (300, action_size)
    assert jnp.allclose(qr, _reference(xr, params), atol=1e-4, rtol=1e-5)

    print("KERNEL_OK")
</pallas_src>

<mosaic_0001>
module attributes {stable_mosaic.version = 11 : i64} {
  func.func @_mlp_kernel(%arg0: i32, %arg1: memref<4x8xf32, #tpu.memory_space<vmem>>, %arg2: memref<32x4xf32, #tpu.memory_space<vmem>>, %arg3: memref<32x1xf32, #tpu.memory_space<vmem>>, %arg4: memref<32x32xf32, #tpu.memory_space<vmem>>, %arg5: memref<32x1xf32, #tpu.memory_space<vmem>>, %arg6: memref<2x32xf32, #tpu.memory_space<vmem>>, %arg7: memref<2x1xf32, #tpu.memory_space<vmem>>, %arg8: memref<2x8xf32, #tpu.memory_space<vmem>>) attributes {dimension_semantics = [#tpu.dimension_semantics<parallel>], iteration_bounds = array<i64: 1>, scalar_prefetch = 0 : i64, scratch_operands = 0 : i64, tpu.core_type = #tpu.core_type<tc>, window_params = [{transform_indices = @transform_0, window_bounds = array<i64: 4, 8>}, {pipeline_mode = #tpu.pipeline_mode<synchronous>, transform_indices = @transform_1, window_bounds = array<i64: 32, 4>}, {pipeline_mode = #tpu.pipeline_mode<synchronous>, transform_indices = @transform_2, window_bounds = array<i64: 32, 1>}, {pipeline_mode = #tpu.pipeline_mode<synchronous>, transform_indices = @transform_3, window_bounds = array<i64: 32, 32>}, {pipeline_mode = #tpu.pipeline_mode<synchronous>, transform_indices = @transform_4, window_bounds = array<i64: 32, 1>}, {pipeline_mode = #tpu.pipeline_mode<synchronous>, transform_indices = @transform_5, window_bounds = array<i64: 2, 32>}, {pipeline_mode = #tpu.pipeline_mode<synchronous>, transform_indices = @transform_6, window_bounds = array<i64: 2, 1>}, {transform_indices = @transform_7, window_bounds = array<i64: 2, 8>}]} {
    %c0 = arith.constant 0 : index
    %c0_0 = arith.constant 0 : index
    %0 = vector.load %arg1[%c0, %c0_0] : memref<4x8xf32, #tpu.memory_space<vmem>>, vector<4x8xf32>
    %c0_1 = arith.constant 0 : index
    %c0_2 = arith.constant 0 : index
    %1 = vector.load %arg2[%c0_1, %c0_2] : memref<32x4xf32, #tpu.memory_space<vmem>>, vector<32x4xf32>
    %c0_3 = arith.constant 0 : index
    %c0_4 = arith.constant 0 : index
    %2 = vector.load %arg3[%c0_3, %c0_4] : memref<32x1xf32, #tpu.memory_space<vmem>>, vector<32x1xf32>
    %c0_5 = arith.constant 0 : index
    %c0_6 = arith.constant 0 : index
    %3 = vector.load %arg4[%c0_5, %c0_6] : memref<32x32xf32, #tpu.memory_space<vmem>>, vector<32x32xf32>
    %c0_7 = arith.constant 0 : index
    %c0_8 = arith.constant 0 : index
    %4 = vector.load %arg5[%c0_7, %c0_8] : memref<32x1xf32, #tpu.memory_space<vmem>>, vector<32x1xf32>
    %c0_9 = arith.constant 0 : index
    %c0_10 = arith.constant 0 : index
    %5 = vector.load %arg6[%c0_9, %c0_10] : memref<2x32xf32, #tpu.memory_space<vmem>>, vector<2x32xf32>
    %c0_11 = arith.constant 0 : index
    %c0_12 = arith.constant 0 : index
    %6 = vector.load %arg7[%c0_11, %c0_12] : memref<2x1xf32, #tpu.memory_space<vmem>>, vector<2x1xf32>
    %cst = arith.constant dense<0.000000e+00> : vector<32x8xf32>
    %7 = tpu.matmul %1, %0, %cst {dimension_numbers = #tpu.dot_dimension_numbers<[1], [0], [0], [1], [0, 0, 1, 1], [], []>} : vector<32x4xf32>, vector<4x8xf32>, vector<32x8xf32> -> vector<32x8xf32>
    %8 = vector.broadcast %2 : vector<32x1xf32> to vector<32x8xf32>
    %9 = arith.addf %7, %8 : vector<32x8xf32>
    %cst_13 = arith.constant 0.000000e+00 : f32
    %10 = vector.broadcast %cst_13 : f32 to vector<32x8xf32>
    %11 = arith.maximumf %9, %10 : vector<32x8xf32>
    %cst_14 = arith.constant dense<0.000000e+00> : vector<32x8xf32>
    %12 = tpu.matmul %3, %11, %cst_14 {dimension_numbers = #tpu.dot_dimension_numbers<[1], [0], [0], [1], [0, 0, 1, 1], [], []>} : vector<32x32xf32>, vector<32x8xf32>, vector<32x8xf32> -> vector<32x8xf32>
    %13 = vector.broadcast %4 : vector<32x1xf32> to vector<32x8xf32>
    %14 = arith.addf %12, %13 : vector<32x8xf32>
    %cst_15 = arith.constant 0.000000e+00 : f32
    %15 = vector.broadcast %cst_15 : f32 to vector<32x8xf32>
    %16 = arith.maximumf %14, %15 : vector<32x8xf32>
    %cst_16 = arith.constant dense<0.000000e+00> : vector<2x8xf32>
    %17 = tpu.matmul %5, %16, %cst_16 {dimension_numbers = #tpu.dot_dimension_numbers<[1], [0], [0], [1], [0, 0, 1, 1], [], []>} : vector<2x32xf32>, vector<32x8xf32>, vector<2x8xf32> -> vector<2x8xf32>
    %18 = vector.broadcast %6 : vector<2x1xf32> to vector<2x8xf32>
    %19 = arith.addf %17, %18 : vector<2x8xf32>
    %c0_17 = arith.constant 0 : index
    %c0_18 = arith.constant 0 : index
    %20 = vector.load %arg8[%c0_17, %c0_18] : memref<2x8xf32, #tpu.memory_space<vmem>>, vector<2x8xf32>
    tpu.vector_store %arg8[%c0_17, %c0_18], %19 {strides = array<i32>} : memref<2x8xf32, #tpu.memory_space<vmem>>, vector<2x8xf32>,
    return
  }
  func.func @transform_0(%arg0: i32) -> (i32, i32) {
    %c0_i32 = arith.constant 0 : i32
    %c0_i32_0 = arith.constant 0 : i32
    return %c0_i32, %arg0 : i32, i32
  }
  func.func @transform_1(%arg0: i32) -> (i32, i32) {
    %c0_i32 = arith.constant 0 : i32
    %c0_i32_0 = arith.constant 0 : i32
    %c0_i32_1 = arith.constant 0 : i32
    return %c0_i32, %c0_i32_0 : i32, i32
  }
  func.func @transform_2(%arg0: i32) -> (i32, i32) {
    %c0_i32 = arith.constant 0 : i32
    %c0_i32_0 = arith.constant 0 : i32
    %c0_i32_1 = arith.constant 0 : i32
    return %c0_i32, %c0_i32_0 : i32, i32
  }
  func.func @transform_3(%arg0: i32) -> (i32, i32) {
    %c0_i32 = arith.constant 0 : i32
    %c0_i32_0 = arith.constant 0 : i32
    %c0_i32_1 = arith.constant 0 : i32
    return %c0_i32, %c0_i32_0 : i32, i32
  }
  func.func @transform_4(%arg0: i32) -> (i32, i32) {
    %c0_i32 = arith.constant 0 : i32
    %c0_i32_0 = arith.constant 0 : i32
    %c0_i32_1 = arith.constant 0 : i32
    return %c0_i32, %c0_i32_0 : i32, i32
  }
  func.func @transform_5(%arg0: i32) -> (i32, i32) {
    %c0_i32 = arith.constant 0 : i32
    %c0_i32_0 = arith.constant 0 : i32
    %c0_i32_1 = arith.constant 0 : i32
    return %c0_i32, %c0_i32_0 : i32, i32
  }
  func.func @transform_6(%arg0: i32) -> (i32, i32) {
    %c0_i32 = arith.constant 0 : i32
    %c0_i32_0 = arith.constant 0 : i32
    %c0_i32_1 = arith.constant 0 : i32
    return %c0_i32, %c0_i32_0 : i32, i32
  }
  func.func @transform_7(%arg0: i32) -> (i32, i32) {
    %c0_i32 = arith.constant 0 : i32
    %c0_i32_0 = arith.constant 0 : i32
    return %c0_i32, %arg0 : i32, i32
  }
}

</mosaic_0001>

<llo_original>
// kernel: tpu_custom_call.1
$region0: #{tpu_custom_call.1}
  #allocation0 [shape = 'u32[]', space=smem, size = 0x4, offset = 0x4, fixed_abs, tag = 'smem constant byte address 0x4 - core index']
  #allocation1 [shape = 'u32[144,128]{1,0:T(1,128)}', space=vmem, size = 0x12000, scoped, tag = 'internal scratch']
  %s0 = inlined_call_operand.vmem [shape: f32[4,8], index: 0, kind: input, shape index: {}]
  %s1 = inlined_call_operand.vmem [shape: f32[32,4], index: 1, kind: input, shape index: {}]
  %s2 = inlined_call_operand.vmem [shape: f32[32,1], index: 2, kind: input, shape index: {}]
  %s3 = inlined_call_operand.vmem [shape: f32[32,32], index: 3, kind: input, shape index: {}]
  %s4 = inlined_call_operand.vmem [shape: f32[32,1], index: 4, kind: input, shape index: {}]
  %s5 = inlined_call_operand.vmem [shape: f32[2,32], index: 5, kind: input, shape index: {}]
  %s6 = inlined_call_operand.vmem [shape: f32[2,1], index: 6, kind: input, shape index: {}]
  %s7 = inlined_call_operand.hbm [shape: f32[2,8], index: 7, kind: output, shape index: {}]
  %s8 = sld [smem:[#allocation0]]
  $region38: #{tpu_custom_call.1} parent=0
    _
  %s10 = ssub.s32 1, %s8
  %s11 = scalar_select 0, %s10, %s8
  $region1: #{tpu_custom_call.1} parent=0
    #allocation2 [shape = 'u8[1024]{0}', space=vmem, size = 0x400, scoped, tag = 'output window, operand 0, single buffered']
    #allocation3 [shape = 's32[1]{0}', space=sflag, size = 0x4, scoped, tag = 'scoped memory for tpu_custom_call.1']
    %12 = vsyncpa [#allocation3], 0
    // Predicated region
    $region2: #{tpu_custom_call.1} parent=1 // pred_check
      _
    $region3: #{tpu_custom_call.1} parent=1 // pred_check_branch
      %14 = sbr.rel (0) target = $region5
    $region4: #{tpu_custom_call.1} parent=1 // pred_region
      _
    $region5: #{tpu_custom_call.1} parent=1 // pred_fallthru
      _
    // Predicated region
    $region6: #{tpu_custom_call.1} parent=1 // pred_check
      _
    $region7: #{tpu_custom_call.1} parent=1 // pred_check_branch
      %16 = sbr.rel (0) target = $region9
    $region8: #{tpu_custom_call.1} parent=1 // pred_region
      _
    $region9: #{tpu_custom_call.1} parent=1 // pred_fallthru
      _
    // Predicated region
    $region10: #{tpu_custom_call.1} parent=1 // pred_check
      _
    $region11: #{tpu_custom_call.1} parent=1 // pred_check_branch
      %18 = sbr.rel (0) target = $region13
    $region12: #{tpu_custom_call.1} parent=1 // pred_region
      _
    $region13: #{tpu_custom_call.1} parent=1 // pred_fallthru
      _
    // Predicated region
    $region14: #{tpu_custom_call.1} parent=1 // pred_check
      _
    $region15: #{tpu_custom_call.1} parent=1 // pred_check_branch
      %20 = sbr.rel (0) target = $region17
    $region16: #{tpu_custom_call.1} parent=1 // pred_region
      _
    $region17: #{tpu_custom_call.1} parent=1 // pred_fallthru
      _
    // Predicated region
    $region18: #{tpu_custom_call.1} parent=1 // pred_check
      _
    $region19: #{tpu_custom_call.1} parent=1 // pred_check_branch
      %22 = sbr.rel (0) target = $region21
    $region20: #{tpu_custom_call.1} parent=1 // pred_region
      _
    $region21: #{tpu_custom_call.1} parent=1 // pred_fallthru
      _
    // Predicated region
    $region22: #{tpu_custom_call.1} parent=1 // pred_check
      _
    $region23: #{tpu_custom_call.1} parent=1 // pred_check_branch
      %24 = sbr.rel (0) target = $region25
    $region24: #{tpu_custom_call.1} parent=1 // pred_region
      _
    $region25: #{tpu_custom_call.1} parent=1 // pred_fallthru
      _
    // Predicated region
    $region26: #{tpu_custom_call.1} parent=1 // pred_check
      _
    $region27: #{tpu_custom_call.1} parent=1 // pred_check_branch
      %26 = sbr.rel (0) target = $region29
    $region28: #{tpu_custom_call.1} parent=1 // pred_region
      _
    $region29: #{tpu_custom_call.1} parent=1 // pred_fallthru
      _
    %v27 = vld [vmem:[%s0] sm:$0xf]
    %v28 = vld [vmem:[%s1] sm:$0xff]
    %v29 = vld [vmem:[%s1 + $0x8] sm:$0xff]
    %v30 = vld [vmem:[%s1 + $0x10] sm:$0xff]
    %v31 = vld [vmem:[%s1 + $0x18] sm:$0xff]
    %v32 = vld [vmem:[%s2] sm:$0xff]
    %v33 = vld [vmem:[%s2 + $0x8] sm:$0xff]
    %v34 = vld [vmem:[%s2 + $0x10] sm:$0xff]
    %v35 = vld [vmem:[%s2 + $0x18] sm:$0xff]
    %v36 = vld [vmem:[%s3] sm:$0xff]
    %v37 = vld [vmem:[%s3 + $0x8] sm:$0xff]
    %v38 = vld [vmem:[%s3 + $0x10] sm:$0xff]
    %v39 = vld [vmem:[%s3 + $0x18] sm:$0xff]
    %v40 = vld [vmem:[%s4] sm:$0xff]
    %v41 = vld [vmem:[%s4 + $0x8] sm:$0xff]
    %v42 = vld [vmem:[%s4 + $0x10] sm:$0xff]
    %v43 = vld [vmem:[%s4 + $0x18] sm:$0xff]
    %v44 = vld [vmem:[%s5] sm:$0x3]
    %v45 = vld [vmem:[%s6] sm:$0x3]
    %47 = vset.pattern.permute.xlu0 0
    %48 = vperm.xlu0 %47, %v32
    %v49 = vpop.permute.xlu0 %48
    %52 = vset.pattern.permute.xlu0 0
    %53 = vperm.xlu0 %52, %v33
    %v54 = vpop.permute.xlu0 %53
    %57 = vset.pattern.permute.xlu0 0
    %58 = vperm.xlu0 %57, %v34
    %v59 = vpop.permute.xlu0 %58
    %62 = vset.pattern.permute.xlu0 0
    %63 = vperm.xlu0 %62, %v35
    %v64 = vpop.permute.xlu0 %63
    %vm66 = vcmask 31744
    %v68 = vsel %vm66, %v28, 0
    %v71 = vsel %vm66, %v29, 0
    %v74 = vsel %vm66, %v30, 0
    %v77 = vsel %vm66, %v31, 0
    %vm79 = vcmask 1043456
    %v81 = vsel %vm79, %v27, 0
    %83 = vmatprep.subr.mxu0 0.0
    %84 = vmatpush1.msra.mxu0 %v81
    %85 = vmatprep.subr.mxu0 0.0
    %86 = vmatpush1.msra.mxu0 0.0
    %87 = vmatprep.subr.mxu0 0.0
    %88 = vmatpush1.msra.mxu0 0.0
    %89 = vmatprep.subr.mxu0 0.0
    %90 = vmatpush1.msra.mxu0 0.0
    %91 = vmatprep.subr.mxu0 0.0
    %92 = vmatpush1.msra.mxu0 0.0
    %93 = vmatprep.subr.mxu0 0.0
    %94 = vmatpush1.msra.mxu0 0.0
    %95 = vmatprep.subr.mxu0 0.0
    %96 = vmatpush1.msra.mxu0 0.0
    %97 = vmatprep.subr.mxu0 0.0
    %98 = vmatpush1.msra.mxu0 0.0
    %99 = vmatprep.subr.mxu0 0.0
    %100 = vmatpush1.msra.mxu0 0.0
    %101 = vmatprep.subr.mxu0 0.0
    %102 = vmatpush1.msra.mxu0 0.0
    %103 = vmatprep.subr.mxu0 0.0
    %104 = vmatpush1.msra.mxu0 0.0
    %105 = vmatprep.subr.mxu0 0.0
    %106 = vmatpush1.msra.mxu0 0.0
    %107 = vmatprep.subr.mxu0 0.0
    %108 = vmatpush1.msra.mxu0 0.0
    %109 = vmatprep.subr.mxu0 0.0
    %110 = vmatpush1.msra.mxu0 0.0
    %111 = vmatprep.subr.mxu0 0.0
    %112 = vmatpush1.msra.mxu0 0.0
    %113 = vmatprep.subr.mxu0 0.0
    %114 = vmatpush1.msra.mxu0 0.0
    %115 = vmatprep.subr.mxu0 0.0
    %116 = vmatpush1.msra.mxu0 0.0
    %117 = vmatprep.subr.mxu0 0.0
    %118 = vmatpush1.msra.mxu0 0.0
    %119 = vmatprep.subr.mxu0 0.0
    %120 = vmatpush1.msra.mxu0 0.0
    %121 = vmatprep.subr.mxu0 0.0
    %122 = vmatpush1.msra.mxu0 0.0
    %123 = vmatprep.subr.mxu0 0.0
    %124 = vmatpush1.msra.mxu0 0.0
    %125 = vmatprep.subr.mxu0 0.0
    %126 = vmatpush1.msra.mxu0 0.0
    %127 = vmatprep.subr.mxu0 0.0
    %128 = vmatpush1.msra.mxu0 0.0
    %129 = vmatprep.subr.mxu0 0.0
    %130 = vmatpush1.msra.mxu0 0.0
    %131 = vmatprep.subr.mxu0 0.0
    %132 = vmatpush1.msra.mxu0 0.0
    %133 = vmatprep.subr.mxu0 0.0
    %134 = vmatpush1.msra.mxu0 0.0
    %135 = vmatprep.subr.mxu0 0.0
    %136 = vmatpush1.msra.mxu0 0.0
    %137 = vmatprep.subr.mxu0 0.0
    %138 = vmatpush1.msra.mxu0 0.0
    %139 = vmatprep.subr.mxu0 0.0
    %140 = vmatpush1.msra.mxu0 0.0
    %141 = vmatprep.subr.mxu0 0.0
    %142 = vmatpush1.msra.mxu0 0.0
    %143 = vmatprep.subr.mxu0 0.0
    %144 = vmatpush1.msra.mxu0 0.0
    %145 = vmatprep.subr.mxu0 0.0
    %146 = vmatpush1.msra.mxu0 0.0
    %147 = vmatprep.mubr.f32.mxu0 0.0
    %148 = vmatmul.mubr.f32.gmra.mrb[0].mxu0 %v68
    %v149 = vpop.f32.mrb[0].mxu0
    %v150 = vadd.f32 %v49, %v149
    %v151 = vpop.f32.mrb[0].mxu0
    %152 = vmatprep.mubr.f32.mxu0 0.0
    %153 = vmatmul.mubr.f32.gmra.mrb[0].mxu0 %v71
    %v154 = vpop.f32.mrb[0].mxu0
    %v155 = vadd.f32 %v54, %v154
    %v156 = vpop.f32.mrb[0].mxu0
    %157 = vmatprep.mubr.f32.mxu0 0.0
    %158 = vmatmul.mubr.f32.gmra.mrb[0].mxu0 %v74
    %v159 = vpop.f32.mrb[0].mxu0
    %v160 = vadd.f32 %v59, %v159
    %v161 = vpop.f32.mrb[0].mxu0
    %162 = vmatprep.mubr.f32.mxu0 0.0
    %163 = vmatmul.mubr.f32.gmra.mrb[0].mxu0 %v77
    %v164 = vpop.f32.mrb[0].mxu0
    %v165 = vadd.f32 %v64, %v164
    %v166 = vpop.f32.mrb[0].mxu0
    %167 = vdwg.mxu0
    %v168 = vmax.f32 %v150, 0.0
    %v169 = vmax.f32 %v155, 0.0
    %v170 = vmax.f32 %v160, 0.0
    %v171 = vmax.f32 %v165, 0.0
    %173 = vset.pattern.permute.xlu0 0
    %174 = vperm.xlu0 %173, %v40
    %v175 = vpop.permute.xlu0 %174
    %178 = vset.pattern.permute.xlu0 0
    %179 = vperm.xlu0 %178, %v41
    %v180 = vpop.permute.xlu0 %179
    %183 = vset.pattern.permute.xlu0 0
    %184 = vperm.xlu0 %183, %v42
    %v185 = vpop.permute.xlu0 %184
    %188 = vset.pattern.permute.xlu0 0
    %189 = vperm.xlu0 %188, %v43
    %v190 = vpop.permute.xlu0 %189
    %vm192 = vcmask 261120
    %v194 = vsel %vm192, %v36, 0
    %v197 = vsel %vm192, %v37, 0
    %v200 = vsel %vm192, %v38, 0
    %v203 = vsel %vm192, %v39, 0
    %205 = vmatprep.subr.mxu0 0.0
    %206 = vmatpush1.msra.mxu0 %v168
    %207 = vmatprep.subr.mxu0 0.0
    %208 = vmatpush1.msra.mxu0 %v169
    %209 = vmatprep.subr.mxu0 0.0
    %210 = vmatpush1.msra.mxu0 %v170
    %211 = vmatprep.subr.mxu0 0.0
    %212 = vmatpush1.msra.mxu0 %v171
    %213 = vmatprep.subr.mxu0 0.0
    %214 = vmatpush1.msra.mxu0 0.0
    %215 = vmatprep.subr.mxu0 0.0
    %216 = vmatpush1.msra.mxu0 0.0
    %217 = vmatprep.subr.mxu0 0.0
    %218 = vmatpush1.msra.mxu0 0.0
    %219 = vmatprep.subr.mxu0 0.0
    %220 = vmatpush1.msra.mxu0 0.0
    %221 = vmatprep.subr.mxu0 0.0
    %222 = vmatpush1.msra.mxu0 0.0
    %223 = vmatprep.subr.mxu0 0.0
    %224 = vmatpush1.msra.mxu0 0.0
    %225 = vmatprep.subr.mxu0 0.0
    %226 = vmatpush1.msra.mxu0 0.0
    %227 = vmatprep.subr.mxu0 0.0
    %228 = vmatpush1.msra.mxu0 0.0
    %229 = vmatprep.subr.mxu0 0.0
    %230 = vmatpush1.msra.mxu0 0.0
    %231 = vmatprep.subr.mxu0 0.0
    %232 = vmatpush1.msra.mxu0 0.0
    %233 = vmatprep.subr.mxu0 0.0
    %234 = vmatpush1.msra.mxu0 0.0
    %235 = vmatprep.subr.mxu0 0.0
    %236 = vmatpush1.msra.mxu0 0.0
    %237 = vmatprep.subr.mxu0 0.0
    %238 = vmatpush1.msra.mxu0 0.0
    %239 = vmatprep.subr.mxu0 0.0
    %240 = vmatpush1.msra.mxu0 0.0
    %241 = vmatprep.subr.mxu0 0.0
    %242 = vmatpush1.msra.mxu0 0.0
    %243 = vmatprep.subr.mxu0 0.0
    %244 = vmatpush1.msra.mxu0 0.0
    %245 = vmatprep.subr.mxu0 0.0
    %246 = vmatpush1.msra.mxu0 0.0
    %247 = vmatprep.subr.mxu0 0.0
    %248 = vmatpush1.msra.mxu0 0.0
    %249 = vmatprep.subr.mxu0 0.0
    %250 = vmatpush1.msra.mxu0 0.0
    %251 = vmatprep.subr.mxu0 0.0
    %252 = vmatpush1.msra.mxu0 0.0
    %253 = vmatprep.subr.mxu0 0.0
    %254 = vmatpush1.msra.mxu0 0.0
    %255 = vmatprep.subr.mxu0 0.0
    %256 = vmatpush1.msra.mxu0 0.0
    %257 = vmatprep.subr.mxu0 0.0
    %258 = vmatpush1.msra.mxu0 0.0
    %259 = vmatprep.subr.mxu0 0.0
    %260 = vmatpush1.msra.mxu0 0.0
    %261 = vmatprep.subr.mxu0 0.0
    %262 = vmatpush1.msra.mxu0 0.0
    %263 = vmatprep.subr.mxu0 0.0
    %264 = vmatpush1.msra.mxu0 0.0
    %265 = vmatprep.subr.mxu0 0.0
    %266 = vmatpush1.msra.mxu0 0.0
    %267 = vmatprep.subr.mxu0 0.0
    %268 = vmatpush1.msra.mxu0 0.0
    %269 = vmatprep.mubr.f32.mxu0 0.0
    %270 = vmatmul.mubr.f32.gmra.mrb[0].mxu0 %v194
    %v271 = vpop.f32.mrb[0].mxu0
    %v272 = vadd.f32 %v175, %v271
    %v273 = vpop.f32.mrb[0].mxu0
    %274 = vmatprep.mubr.f32.mxu0 0.0
    %275 = vmatmul.mubr.f32.gmra.mrb[0].mxu0 %v197
    %v276 = vpop.f32.mrb[0].mxu0
    %v277 = vadd.f32 %v180, %v276
    %v278 = vpop.f32.mrb[0].mxu0
    %279 = vmatprep.mubr.f32.mxu0 0.0
    %280 = vmatmul.mubr.f32.gmra.mrb[0].mxu0 %v200
    %v281 = vpop.f32.mrb[0].mxu0
    %v282 = vadd.f32 %v185, %v281
    %v283 = vpop.f32.mrb[0].mxu0
    %284 = vmatprep.mubr.f32.mxu0 0.0
    %285 = vmatmul.mubr.f32.gmra.mrb[0].mxu0 %v203
    %v286 = vpop.f32.mrb[0].mxu0
    %v287 = vadd.f32 %v190, %v286
    %v288 = vpop.f32.mrb[0].mxu0
    %289 = vdwg.mxu0
    %v290 = vmax.f32 %v272, 0.0
    %v291 = vmax.f32 %v277, 0.0
    %v292 = vmax.f32 %v282, 0.0
    %v293 = vmax.f32 %v287, 0.0
    %295 = vset.pattern.permute.xlu0 0
    %296 = vperm.xlu0 %295, %v45
    %v297 = vpop.permute.xlu0 %296
    %v300 = vsel %vm192, %v44, 0
    %302 = vmatprep.subr.mxu0 0.0
    %303 = vmatpush1.msra.mxu0 %v290
    %304 = vmatprep.subr.mxu0 0.0
    %305 = vmatpush1.msra.mxu0 %v291
    %306 = vmatprep.subr.mxu0 0.0
    %307 = vmatpush1.msra.mxu0 %v292
    %308 = vmatprep.subr.mxu0 0.0
    %309 = vmatpush1.msra.mxu0 %v293
    %310 = vmatprep.subr.mxu0 0.0
    %311 = vmatpush1.msra.mxu0 0.0
    %312 = vmatprep.subr.mxu0 0.0
    %313 = vmatpush1.msra.mxu0 0.0
    %314 = vmatprep.subr.mxu0 0.0
    %315 = vmatpush1.msra.mxu0 0.0
    %316 = vmatprep.subr.mxu0 0.0
    %317 = vmatpush1.msra.mxu0 0.0
    %318 = vmatprep.subr.mxu0 0.0
    %319 = vmatpush1.msra.mxu0 0.0
    %320 = vmatprep.subr.mxu0 0.0
    %321 = vmatpush1.msra.mxu0 0.0
    %322 = vmatprep.subr.mxu0 0.0
    %323 = vmatpush1.msra.mxu0 0.0
    %324 = vmatprep.subr.mxu0 0.0
    %325 = vmatpush1.msra.mxu0 0.0
    %326 = vmatprep.subr.mxu0 0.0
    %327 = vmatpush1.msra.mxu0 0.0
    %328 = vmatprep.subr.mxu0 0.0
    %329 = vmatpush1.msra.mxu0 0.0
    %330 = vmatprep.subr.mxu0 0.0
    %331 = vmatpush1.msra.mxu0 0.0
    %332 = vmatprep.subr.mxu0 0.0
    %333 = vmatpush1.msra.mxu0 0.0
    %334 = vmatprep.subr.mxu0 0.0
    %335 = vmatpush1.msra.mxu0 0.0
    %336 = vmatprep.subr.mxu0 0.0
    %337 = vmatpush1.msra.mxu0 0.0
    %338 = vmatprep.subr.mxu0 0.0
    %339 = vmatpush1.msra.mxu0 0.0
    %340 = vmatprep.subr.mxu0 0.0
    %341 = vmatpush1.msra.mxu0 0.0
    %342 = vmatprep.subr.mxu0 0.0
    %343 = vmatpush1.msra.mxu0 0.0
    %344 = vmatprep.subr.mxu0 0.0
    %345 = vmatpush1.msra.mxu0 0.0
    %346 = vmatprep.subr.mxu0 0.0
    %347 = vmatpush1.msra.mxu0 0.0
    %348 = vmatprep.subr.mxu0 0.0
    %349 = vmatpush1.msra.mxu0 0.0
    %350 = vmatprep.subr.mxu0 0.0
    %351 = vmatpush1.msra.mxu0 0.0
    %352 = vmatprep.subr.mxu0 0.0
    %353 = vmatpush1.msra.mxu0 0.0
    %354 = vmatprep.subr.mxu0 0.0
    %355 = vmatpush1.msra.mxu0 0.0
    %356 = vmatprep.subr.mxu0 0.0
    %357 = vmatpush1.msra.mxu0 0.0
    %358 = vmatprep.subr.mxu0 0.0
    %359 = vmatpush1.msra.mxu0 0.0
    %360 = vmatprep.subr.mxu0 0.0
    %361 = vmatpush1.msra.mxu0 0.0
    %362 = vmatprep.subr.mxu0 0.0
    %363 = vmatpush1.msra.mxu0 0.0
    %364 = vmatprep.subr.mxu0 0.0
    %365 = vmatpush1.msra.mxu0 0.0
    %366 = vmatprep.mubr.f32.mxu0 0.0
    %367 = vmatmul.mubr.f32.gmra.mrb[0].mxu0 %v300
    %v368 = vpop.f32.mrb[0].mxu0
    %v369 = vadd.f32 %v297, %v368
    %v370 = vpop.f32.mrb[0].mxu0
    %371 = vdwg.mxu0
    %vm372 = vcmask 58368
    %373 = vst.msk [vmem:[#allocation2] sm:$0x3] %vm372, %v369
    // Predicated region
    $region30: #{tpu_custom_call.1} parent=1 // pred_check
      _
    $region31: #{tpu_custom_call.1} parent=1 // pred_check_branch
      %375 = sbr.rel (0) target = $region33
    $region32: #{tpu_custom_call.1} parent=1 // pred_region
      %s377 = ssub.s32 32, 32
      %378 = vsyncadd [#allocation3], %s377
      %s380 = sshll.u32 [#allocation2], 4
      %s381 = int_to_ptr.vmem [resolvable:$true] %s380
      %383 = dma.vmem_to_hbm [thread:$0]  %s381, 32, %s7, [#allocation3]
    $region33: #{tpu_custom_call.1} parent=1 // pred_fallthru
      _
    // Predicated region
    $region34: #{tpu_custom_call.1} parent=1 // pred_check
      _
    $region35: #{tpu_custom_call.1} parent=1 // pred_check_branch
      %385 = sbr.rel (0) target = $region37
    $region36: #{tpu_custom_call.1} parent=1 // pred_region
      %386 = dma.done [#allocation3], 32
    $region37: #{tpu_custom_call.1} parent=1 // pred_fallthru
      _
    %387 = vsyncpa [#allocation3], 1

</llo_original>
